<compile_context>
chip_gen: v6e
topology: v6e:2x2x1
jax: 0.10.0
libtpu: 0.0.40
codegen_flags: <defaults>
</compile_context>

<pallas_src>
import math
import functools

import jax
import jax.numpy as jnp
from jax.experimental import pallas as pl
from jax.experimental.pallas import tpu as pltpu


# ----------------------------------------------------------------------------
# Buffer construction (plain JAX glue) — matches PositionalEncoding.__init__
# ----------------------------------------------------------------------------
def make_positional_encoding(d_model: int, max_len: int, dtype=jnp.float32):
    """pe buffer, shape [max_len, d_model] (torch keeps [max_len, 1, d_model])."""
    position = jnp.arange(max_len, dtype=jnp.float32)[:, None]            # [max_len, 1]
    div_term = jnp.exp(
        jnp.arange(0, d_model, 2, dtype=jnp.float32) * (-math.log(10000.0) / d_model)
    )                                                                     # [d_model/2]
    pe = jnp.zeros((max_len, d_model), dtype=jnp.float32)
    pe = pe.at[:, 0::2].set(jnp.sin(position * div_term))
    pe = pe.at[:, 1::2].set(jnp.cos(position * div_term))
    return pe.astype(dtype)


# ----------------------------------------------------------------------------
# Pallas kernels — native [S, B, D] tiles: x (ts, tb, D), pe (ts, 1, D)
# ----------------------------------------------------------------------------
def _pe_add_kernel(x_ref, pe_ref, o_ref):
    # Eval-mode forward (dropout == identity): one VPU add; the (ts, 1, D) pe
    # block broadcasts over the batch block dim.
    o_ref[...] = (x_ref[...] + pe_ref[...]).astype(o_ref.dtype)


def _pe_add_dropout_kernel(seed_ref, x_ref, pe_ref, o_ref, *, p: float):
    # Train-mode forward: out = dropout(x + pe, p) using the on-chip PRNG.
    # Mix the tile id into the seed so every grid block draws an independent mask.
    tile_id = pl.program_id(0) * pl.num_programs(1) + pl.program_id(1)
    pltpu.prng_seed(seed_ref[0] + tile_id)
    y = x_ref[...] + pe_ref[...]                       # stay in the input dtype
    bits = pltpu.bitcast(pltpu.prng_random_bits(y.shape), jnp.uint32)
    # keep with prob (1 - p); truncation bias of int(p * 2**32) is ~1e-10.
    threshold = jnp.uint32(min(int(p * (2 ** 32)), (2 ** 32) - 1))
    keep = bits >= threshold
    scale = jnp.asarray(1.0 / (1.0 - p), dtype=y.dtype)
    o_ref[...] = jnp.where(keep, y * scale, jnp.zeros((), y.dtype)).astype(o_ref.dtype)


# ----------------------------------------------------------------------------
# Tiling / wrapper
# ----------------------------------------------------------------------------
_TARGET_BLOCK_BYTES = 8 * 1024 * 1024   # per-buffer block (4-8 MiB safe on v7x's 64 MiB VMEM)
_VMEM_LIMIT_BYTES = 48 * 1024 * 1024    # > v5e's 16 MiB default scoped limit, < v7x physical


def _choose_tiles(S, B, D, itemsize):
    """Pick (ts, tb) for a (ts, tb, D) block: tb is 8-aligned or the full batch,
    ts fills the ~_TARGET_BLOCK_BYTES budget. The lane dim is always the full D."""
    budget_elems = max(1, _TARGET_BLOCK_BYTES // itemsize)
    if B % 8 == 0:
        tb = min(B, 128, max(8, (budget_elems // max(D, 1)) // 8 * 8))
    else:
        tb = B                                   # partial sublane blocks not allowed
    ts = max(1, min(S, budget_elems // max(tb * D, 1)))
    return ts, tb


def positional_encoding_forward(x, pe_table, *, training: bool = False,
                                dropout_p: float = 0.1, seed: int = 0,
                                donate_input: bool = False):
    """x: [seq_len, batch, d_model] ; pe_table: [max_len, d_model]."""
    S, B, D = x.shape
    assert pe_table.shape[0] >= S and pe_table.shape[1] == D

    # Free reshape of the *full* pe buffer to [max_len, 1, D]; the BlockSpec
    # windows only the rows the grid touches, so no HBM slice is materialized.
    pe3 = pe_table.astype(x.dtype).reshape(pe_table.shape[0], 1, D)

    itemsize = jnp.dtype(x.dtype).itemsize
    ts, tb = _choose_tiles(S, B, D, itemsize)
    grid = (pl.cdiv(S, ts), pl.cdiv(B, tb))      # batch is the inner axis -> pe stays resident

    cparams = pltpu.CompilerParams(
        dimension_semantics=("parallel", "parallel"),   # megacore-shardable (v7x)
        vmem_limit_bytes=_VMEM_LIMIT_BYTES,
    )
    out_shape = jax.ShapeDtypeStruct((S, B, D), x.dtype)
    cost = pl.CostEstimate(flops=S * B * D, transcendentals=0,
                           bytes_accessed=(2 * S * B * D + S * D) * itemsize)

    if (not training) or dropout_p <= 0.0:
        grid_spec = pltpu.PrefetchScalarGridSpec(
            num_scalar_prefetch=0,
            grid=grid,
            in_specs=[
                pl.BlockSpec((ts, tb, D), lambda s, b: (s, b, 0)),
                pl.BlockSpec((ts, 1, D), lambda s, b: (s, 0, 0)),
            ],
            out_specs=pl.BlockSpec((ts, tb, D), lambda s, b: (s, b, 0)),
        )
        return pl.pallas_call(
            _pe_add_kernel,
            out_shape=out_shape,
            grid_spec=grid_spec,
            compiler_params=cparams,
            cost_estimate=cost,
            # Alias x onto the output when the caller donates it (same shape/dtype).
            input_output_aliases={0: 0} if donate_input else {},
        )(x, pe3)

    kernel = functools.partial(_pe_add_dropout_kernel, p=float(dropout_p))
    seed_arr = jnp.asarray([seed], dtype=jnp.int32)
    grid_spec = pltpu.PrefetchScalarGridSpec(
        num_scalar_prefetch=1,                           # seed lands in SMEM
        grid=grid,
        in_specs=[
            pl.BlockSpec((ts, tb, D), lambda s, b, seed_ref: (s, b, 0)),
            pl.BlockSpec((ts, 1, D), lambda s, b, seed_ref: (s, 0, 0)),
        ],
        out_specs=pl.BlockSpec((ts, tb, D), lambda s, b, seed_ref: (s, b, 0)),
    )
    return pl.pallas_call(
        kernel,
        out_shape=out_shape,
        grid_spec=grid_spec,
        compiler_params=cparams,
        cost_estimate=cost,
    )(seed_arr, x, pe3)


# ----------------------------------------------------------------------------
# Demo / self-test
# ----------------------------------------------------------------------------
if __name__ == "__main__":
    seq_len, batch, max_len = 8, 4, 64

    # Case 1: lane-aligned d_model (typical case).
    d_model = 128
    key = jax.random.PRNGKey(0)
    x = jax.random.normal(key, (seq_len, batch, d_model), dtype=jnp.float32)
    pe_table = make_positional_encoding(d_model, max_len)
    ref = x + pe_table[:seq_len][:, None, :]

    out = positional_encoding_forward(x, pe_table, training=False)
    out = jax.block_until_ready(out)
    assert out.shape == x.shape and out.dtype == x.dtype
    assert jnp.allclose(out, ref, atol=1e-6, rtol=1e-6)

    # Case 2: small, non-lane-aligned d_model (same native-layout path; the
    # last block dim equals the full array extent so no (8,128) violation).
    d_small = 32
    x_s = jax.random.normal(jax.random.PRNGKey(1), (seq_len, batch, d_small),
                            dtype=jnp.float32)
    pe_s = make_positional_encoding(d_small, max_len)
    ref_s = x_s + pe_s[:seq_len][:, None, :]
    out_s = jax.block_until_ready(positional_encoding_forward(x_s, pe_s, training=False))
    assert out_s.shape == x_s.shape
    assert jnp.allclose(out_s, ref_s, atol=1e-6, rtol=1e-6)

    # Train-mode dropout uses the on-chip TPU PRNG (no CPU/interpret lowering
    # exists for prng_seed), so only exercise it on a real TPU backend.
    if jax.devices()[0].platform == "tpu":
        p = 0.1
        out_tr = jax.block_until_ready(
            positional_encoding_forward(x, pe_table, training=True,
                                        dropout_p=p, seed=42))
        assert out_tr.shape == x.shape and out_tr.dtype == x.dtype
        kept = out_tr != 0.0
        scaled_err = jnp.where(kept, out_tr - ref / (1.0 - p), 0.0)
        assert float(jnp.max(jnp.abs(scaled_err))) < 1e-4
        drop_frac = 1.0 - float(jnp.mean(kept.astype(jnp.float32)))
        assert 0.0 <= drop_frac <= 0.5

    print("KERNEL_OK")
</pallas_src>

<mosaic_0001>
module attributes {stable_mosaic.version = 11 : i64} {
  func.func @_pe_add_kernel(%arg0: i32, %arg1: i32, %arg2: memref<8x4x128xf32, #tpu.memory_space<vmem>>, %arg3: memref<8x1x128xf32, #tpu.memory_space<vmem>>, %arg4: memref<8x4x128xf32, #tpu.memory_space<vmem>>) attributes {dimension_semantics = [#tpu.dimension_semantics<parallel>, #tpu.dimension_semantics<parallel>], iteration_bounds = array<i64: 1, 1>, scalar_prefetch = 0 : i64, scratch_operands = 0 : i64, tpu.core_type = #tpu.core_type<tc>, window_params = [{transform_indices = @transform_0, window_bounds = array<i64: 8, 4, 128>}, {transform_indices = @transform_1, window_bounds = array<i64: 8, 1, 128>}, {transform_indices = @transform_2, window_bounds = array<i64: 8, 4, 128>}]} {
    %c0 = arith.constant 0 : index
    %c0_0 = arith.constant 0 : index
    %c0_1 = arith.constant 0 : index
    %0 = vector.load %arg2[%c0, %c0_0, %c0_1] : memref<8x4x128xf32, #tpu.memory_space<vmem>>, vector<8x4x128xf32>
    %c0_2 = arith.constant 0 : index
    %c0_3 = arith.constant 0 : index
    %c0_4 = arith.constant 0 : index
    %1 = vector.load %arg3[%c0_2, %c0_3, %c0_4] : memref<8x1x128xf32, #tpu.memory_space<vmem>>, vector<8x1x128xf32>
    %2 = vector.broadcast %1 : vector<8x1x128xf32> to vector<8x4x128xf32>
    %3 = arith.addf %0, %2 : vector<8x4x128xf32>
    %c0_5 = arith.constant 0 : index
    %c0_6 = arith.constant 0 : index
    %c0_7 = arith.constant 0 : index
    %4 = vector.load %arg4[%c0_5, %c0_6, %c0_7] : memref<8x4x128xf32, #tpu.memory_space<vmem>>, vector<8x4x128xf32>
    tpu.vector_store %arg4[%c0_5, %c0_6, %c0_7], %3 {strides = array<i32>} : memref<8x4x128xf32, #tpu.memory_space<vmem>>, vector<8x4x128xf32>,
    return
  }
  func.func @transform_0(%arg0: i32, %arg1: i32) -> (i32, i32, i32) {
    %c0_i32 = arith.constant 0 : i32
    %c0_i32_0 = arith.constant 0 : i32
    return %arg0, %arg1, %c0_i32 : i32, i32, i32
  }
  func.func @transform_1(%arg0: i32, %arg1: i32) -> (i32, i32, i32) {
    %c0_i32 = arith.constant 0 : i32
    %c0_i32_0 = arith.constant 0 : i32
    %c0_i32_1 = arith.constant 0 : i32
    return %arg0, %c0_i32, %c0_i32_0 : i32, i32, i32
  }
  func.func @transform_2(%arg0: i32, %arg1: i32) -> (i32, i32, i32) {
    %c0_i32 = arith.constant 0 : i32
    %c0_i32_0 = arith.constant 0 : i32
    return %arg0, %arg1, %c0_i32 : i32, i32, i32
  }
}

</mosaic_0001>

<llo_original>
// kernel: tpu_custom_call.1
$region0: #{tpu_custom_call.1}
  #allocation0 [shape = 'u32[]', space=smem, size = 0x4, offset = 0x4, fixed_abs, tag = 'smem constant byte address 0x4 - core index']
  #allocation1 [shape = 'u32[144,128]{1,0:T(1,128)}', space=vmem, size = 0x12000, scoped, tag = 'internal scratch']
  %s0 = inlined_call_operand.hbm [shape: f32[8,4,128], index: 0, kind: input, shape index: {}]
  %s1 = inlined_call_operand.hbm [shape: f32[64,1,128], index: 1, kind: input, shape index: {}]
  %s2 = inlined_call_operand.hbm [shape: f32[8,4,128], index: 2, kind: output, shape index: {}]
  %s3 = sld [smem:[#allocation0]]
  $region26: #{tpu_custom_call.1} parent=0
    _
  %s5 = ssub.s32 1, %s3
  %s6 = scalar_select 0, %s5, %s3
  $region1: #{tpu_custom_call.1} parent=0
    #allocation2 [shape = 'u8[16384]{0}', space=vmem, size = 0x4000, scoped, tag = 'input window, operand 0, single buffered']
    #allocation3 [shape = 's32[1]{0}', space=sflag, size = 0x4, scoped, tag = 'scoped memory for tpu_custom_call.1']
    #allocation4 [shape = 's32[1]{0}', space=sflag, size = 0x4, scoped, tag = 'scoped memory for tpu_custom_call.1']
    #allocation5 [shape = 'u8[4096]{0}', space=vmem, size = 0x1000, scoped, tag = 'input window, operand 1, single buffered']
    #allocation6 [shape = 's32[1]{0}', space=sflag, size = 0x4, scoped, tag = 'scoped memory for tpu_custom_call.1']
    #allocation7 [shape = 'u8[16384]{0}', space=vmem, size = 0x4000, scoped, tag = 'output window, operand 0, single buffered']
    %7 = vsyncpa [#allocation3], 0
    %8 = vsyncpa [#allocation6], 0
    %9 = vsyncpa [#allocation4], 0
    // Predicated region
    $region2: #{tpu_custom_call.1} parent=1 // pred_check
      _
    $region3: #{tpu_custom_call.1} parent=1 // pred_check_branch
      %11 = sbr.rel (0) target = $region5
    $region4: #{tpu_custom_call.1} parent=1 // pred_region
      %s13 = ssub.s32 512, 512
      %14 = vsyncadd [#allocation3], %s13
      %s15 = sshll.u32 [#allocation2], 4
      %s16 = int_to_ptr.vmem [resolvable:$true] %s15
      %21 = dma.hbm_to_vmem [thread:$0]  %s0, 512, %s16, [#allocation3], 64, 64, 4
    $region5: #{tpu_custom_call.1} parent=1 // pred_fallthru
      _
    // Predicated region
    $region6: #{tpu_custom_call.1} parent=1 // pred_check
      _
    $region7: #{tpu_custom_call.1} parent=1 // pred_check_branch
      %23 = sbr.rel (0) target = $region9
    $region8: #{tpu_custom_call.1} parent=1 // pred_region
      %s25 = ssub.s32 128, 128
      %26 = vsyncadd [#allocation6], %s25
      %s27 = sshll.u32 [#allocation5], 4
      %s28 = int_to_ptr.vmem [resolvable:$true] %s27
      %33 = dma.hbm_to_vmem [thread:$0]  %s1, 128, %s28, [#allocation6], 16, 16, 1
    $region9: #{tpu_custom_call.1} parent=1 // pred_fallthru
      _
    // Predicated region
    $region10: #{tpu_custom_call.1} parent=1 // pred_check
      _
    $region11: #{tpu_custom_call.1} parent=1 // pred_check_branch
      %35 = sbr.rel (0) target = $region13
    $region12: #{tpu_custom_call.1} parent=1 // pred_region
      %36 = dma.done [#allocation3], 512
    $region13: #{tpu_custom_call.1} parent=1 // pred_fallthru
      _
    // Predicated region
    $region14: #{tpu_custom_call.1} parent=1 // pred_check
      _
    $region15: #{tpu_custom_call.1} parent=1 // pred_check_branch
      %38 = sbr.rel (0) target = $region17
    $region16: #{tpu_custom_call.1} parent=1 // pred_region
      %39 = dma.done [#allocation6], 128
    $region17: #{tpu_custom_call.1} parent=1 // pred_fallthru
      _
    %v40 = vld [vmem:[#allocation2] sm:$0xf]
    %v41 = vld [vmem:[#allocation2 + $0x4] sm:$0xf]
    %v42 = vld [vmem:[#allocation2 + $0x8] sm:$0xf]
    %v43 = vld [vmem:[#allocation2 + $0xc] sm:$0xf]
    %v44 = vld [vmem:[#allocation2 + $0x10] sm:$0xf]
    %v45 = vld [vmem:[#allocation2 + $0x14] sm:$0xf]
    %v46 = vld [vmem:[#allocation2 + $0x18] sm:$0xf]
    %v47 = vld [vmem:[#allocation2 + $0x1c] sm:$0xf]
    %v48 = vld [vmem:[#allocation5] sm:$0x1]
    %v49 = vld [vmem:[#allocation5 + $0x1] sm:$0x1]
    %v50 = vld [vmem:[#allocation5 + $0x2] sm:$0x1]
    %v51 = vld [vmem:[#allocation5 + $0x3] sm:$0x1]
    %v52 = vld [vmem:[#allocation5 + $0x4] sm:$0x1]
    %v53 = vld [vmem:[#allocation5 + $0x5] sm:$0x1]
    %v54 = vld [vmem:[#allocation5 + $0x6] sm:$0x1]
    %v55 = vld [vmem:[#allocation5 + $0x7] sm:$0x1]
    %v64 = vlaneseq
    %v65 = vshrl.u32 %v64, 7
    %v66 = vsub.s32 0, %v65
    %v67 = vrot.slane %v48, %v66
    %v68 = vlaneseq
    %v69 = vshrl.u32 %v68, 7
    %v70 = vsub.s32 0, %v69
    %v71 = vrot.slane %v49, %v70
    %v72 = vlaneseq
    %v73 = vshrl.u32 %v72, 7
    %v74 = vsub.s32 0, %v73
    %v75 = vrot.slane %v50, %v74
    %v76 = vlaneseq
    %v77 = vshrl.u32 %v76, 7
    %v78 = vsub.s32 0, %v77
    %v79 = vrot.slane %v51, %v78
    %v80 = vlaneseq
    %v81 = vshrl.u32 %v80, 7
    %v82 = vsub.s32 0, %v81
    %v83 = vrot.slane %v52, %v82
    %v84 = vlaneseq
    %v85 = vshrl.u32 %v84, 7
    %v86 = vsub.s32 0, %v85
    %v87 = vrot.slane %v53, %v86
    %v88 = vlaneseq
    %v89 = vshrl.u32 %v88, 7
    %v90 = vsub.s32 0, %v89
    %v91 = vrot.slane %v54, %v90
    %v92 = vlaneseq
    %v93 = vshrl.u32 %v92, 7
    %v94 = vsub.s32 0, %v93
    %v95 = vrot.slane %v55, %v94
    %v104 = vadd.f32 %v40, %v67
    %v105 = vadd.f32 %v41, %v71
    %v106 = vadd.f32 %v42, %v75
    %v107 = vadd.f32 %v43, %v79
    %v108 = vadd.f32 %v44, %v83
    %v109 = vadd.f32 %v45, %v87
    %v110 = vadd.f32 %v46, %v91
    %v111 = vadd.f32 %v47, %v95
    %112 = vst [vmem:[#allocation7] sm:$0xf] %v104
    %113 = vst [vmem:[#allocation7 + $0x4] sm:$0xf] %v105
    %114 = vst [vmem:[#allocation7 + $0x8] sm:$0xf] %v106
    %115 = vst [vmem:[#allocation7 + $0xc] sm:$0xf] %v107
    %116 = vst [vmem:[#allocation7 + $0x10] sm:$0xf] %v108
    %117 = vst [vmem:[#allocation7 + $0x14] sm:$0xf] %v109
    %118 = vst [vmem:[#allocation7 + $0x18] sm:$0xf] %v110
    %119 = vst [vmem:[#allocation7 + $0x1c] sm:$0xf] %v111
    // Predicated region
    $region18: #{tpu_custom_call.1} parent=1 // pred_check
      _
    $region19: #{tpu_custom_call.1} parent=1 // pred_check_branch
      %121 = sbr.rel (0) target = $region21
    $region20: #{tpu_custom_call.1} parent=1 // pred_region
      %s123 = ssub.s32 512, 512
      %124 = vsyncadd [#allocation4], %s123
      %s125 = sshll.u32 [#allocation7], 4
      %s126 = int_to_ptr.vmem [resolvable:$true] %s125
      %131 = dma.vmem_to_hbm [thread:$0]  %s126, 512, %s2, [#allocation4], 64, 64, 4
    $region21: #{tpu_custom_call.1} parent=1 // pred_fallthru
      _
    // Predicated region
    $region22: #{tpu_custom_call.1} parent=1 // pred_check
      _
    $region23: #{tpu_custom_call.1} parent=1 // pred_check_branch
      %133 = sbr.rel (0) target = $region25
    $region24: #{tpu_custom_call.1} parent=1 // pred_region
      %134 = dma.done [#allocation4], 512
    $region25: #{tpu_custom_call.1} parent=1 // pred_fallthru
      _
    %135 = vsyncpa [#allocation3], 1
    %136 = vsyncpa [#allocation6], 1
    %137 = vsyncpa [#allocation4], 1

</llo_original>
